<compile_context>
chip_gen: v5e
topology: v5e:2x2
jax: 0.10.0
libtpu: 0.0.40
codegen_flags: <defaults>
</compile_context>

<pallas_src>
import functools

import jax
import jax.numpy as jnp
from jax import lax
from jax.experimental import pallas as pl
from jax.experimental.pallas import tpu as pltpu


def _round_up(x, m):
    return ((x + m - 1) // m) * m


def _actor_kernel(action_dim, s_ref, w1_ref, w2_ref, wh_ref,
                  b1_ref, b2_ref, bh_ref, out_ref):
    """One batch tile: state (TB, S) -> out (TB, HP) laid out as [mean | std | pad]."""
    A = action_dim
    cdt = w1_ref.dtype            # MXU operand dtype (bf16); accumulation stays f32

    x = s_ref[...].astype(cdt)                                             # (TB, S)
    h1 = jnp.dot(x, w1_ref[...], preferred_element_type=jnp.float32)
    h1 = jnp.maximum(h1 + b1_ref[...], 0.0)                                # (TB, H) f32
    h2 = jnp.dot(h1.astype(cdt), w2_ref[...], preferred_element_type=jnp.float32)
    h2 = jnp.maximum(h2 + b2_ref[...], 0.0)                                # (TB, H) f32

    # Fused, lane-padded head: cols [0, A) = mean, [A, 2A) = log_std, rest = pad.
    head = jnp.dot(h2.astype(cdt), wh_ref[...], preferred_element_type=jnp.float32)
    head = head + bh_ref[...]                                              # (TB, HP) f32

    # clamp+exp applied to the log_std half via a lane mask (no in-kernel lane
    # slicing / concat).  Clipping BEFORE exp keeps the throwaway columns and
    # any undefined partial-block rows finite.
    col = lax.broadcasted_iota(jnp.int32, head.shape, 1)
    std_all = jnp.exp(jnp.clip(head, -20.0, 2.0))
    out_ref[...] = jnp.where(col >= A, std_all, head).astype(out_ref.dtype)


def _choose_batch_tile(B):
    """Batch tile: multiple of 8, capped at 512, >= 2 tiles for moderate batches
    so the 'parallel' grid axis shards across both v7x TensorCores."""
    TB_MAX = 512
    if B <= 16:
        return _round_up(max(B, 1), 8)
    return min(TB_MAX, _round_up(pl.cdiv(B, 2), 8))


def actor_forward(state, params):
    """state: (B, state_dim) f32.  Returns (mean, std), each (B, action_dim) f32."""
    B, S = state.shape
    w1, w2, wh = params["w1"], params["w2"], params["wh"]
    b1, b2, bh = params["b1"], params["b2"], params["bh"]
    A = params["action_dim"]
    H = w1.shape[1]
    HP = wh.shape[1]              # 128-lane-padded fused head width (>= 2A)

    TB = _choose_batch_tile(B)
    grid = (pl.cdiv(B, TB),)

    kernel = functools.partial(_actor_kernel, A)

    w_itemsize = jnp.dtype(w1.dtype).itemsize
    flops = 2 * B * (S * H + H * H + H * HP)
    bytes_accessed = (B * S * 4 + B * HP * 4
                      + (S * H + H * H + H * HP) * w_itemsize
                      + (2 * H + HP) * 4)
    cost = pl.CostEstimate(flops=flops, transcendentals=B * HP,
                           bytes_accessed=bytes_accessed)

    # VMEM budget: double-buffered IO tiles + resident weights/biases + slack.
    # Capped below v7x's 64 MiB physical VMEM.
    vmem_est = (2 * (TB * S * 4 + TB * HP * 4)
                + 2 * ((S * H + H * H + H * HP) * w_itemsize + (2 * H + HP) * 4)
                + (4 << 20))
    vmem_limit = int(min(max(vmem_est, 32 << 20), 60 << 20))

    out = pl.pallas_call(
        kernel,
        out_shape=jax.ShapeDtypeStruct((B, HP), jnp.float32),
        grid=grid,
        in_specs=[
            pl.BlockSpec((TB, S), lambda i: (i, 0)),     # state tile
            pl.BlockSpec((S, H), lambda i: (0, 0)),      # w1 (VMEM-resident)
            pl.BlockSpec((H, H), lambda i: (0, 0)),      # w2
            pl.BlockSpec((H, HP), lambda i: (0, 0)),     # fused, lane-padded head W
            pl.BlockSpec((1, H), lambda i: (0, 0)),      # b1
            pl.BlockSpec((1, H), lambda i: (0, 0)),      # b2
            pl.BlockSpec((1, HP), lambda i: (0, 0)),     # head bias (padded)
        ],
        out_specs=pl.BlockSpec((TB, HP), lambda i: (i, 0)),  # lane-dense [mean|std|pad]
        compiler_params=pltpu.CompilerParams(
            dimension_semantics=("parallel",),
            vmem_limit_bytes=vmem_limit,
        ),
        cost_estimate=cost,
    )(state, w1, w2, wh, b1, b2, bh)

    mean = out[:, :A]
    std = out[:, A:2 * A]
    return mean, std


def init_actor_params(key, state_dim, action_dim, hidden_dim,
                      weight_dtype=jnp.bfloat16):
    """Deterministic init mimicking nn.Linear default (uniform ±1/sqrt(fan_in)).

    Weights stored as (in_features, out_features); the mean / log_std heads are
    fused and zero-padded to a 128-lane multiple; biases stay f32."""
    def linear(k, fan_in, fan_out):
        kw, kb = jax.random.split(k)
        bound = 1.0 / jnp.sqrt(fan_in)
        w = jax.random.uniform(kw, (fan_in, fan_out), jnp.float32, -bound, bound)
        b = jax.random.uniform(kb, (1, fan_out), jnp.float32, -bound, bound)
        return w, b

    k1, k2, k3, k4 = jax.random.split(key, 4)
    w1, b1 = linear(k1, state_dim, hidden_dim)
    w2, b2 = linear(k2, hidden_dim, hidden_dim)
    wm, bm = linear(k3, hidden_dim, action_dim)
    ws, bs = linear(k4, hidden_dim, action_dim)

    head_pad = _round_up(max(2 * action_dim, 128), 128)
    wh = jnp.zeros((hidden_dim, head_pad), jnp.float32)
    wh = wh.at[:, :action_dim].set(wm).at[:, action_dim:2 * action_dim].set(ws)
    bh = jnp.zeros((1, head_pad), jnp.float32)
    bh = bh.at[:, :action_dim].set(bm).at[:, action_dim:2 * action_dim].set(bs)

    return {
        "w1": w1.astype(weight_dtype),
        "w2": w2.astype(weight_dtype),
        "wh": wh.astype(weight_dtype),
        "b1": b1, "b2": b2, "bh": bh,
        "action_dim": int(action_dim),
    }


def actor_reference(state, p):
    """Plain-JAX f32 reference matching the PyTorch forward (same weight values)."""
    A = p["action_dim"]
    w1 = p["w1"].astype(jnp.float32)
    w2 = p["w2"].astype(jnp.float32)
    wh = p["wh"].astype(jnp.float32)
    x = jnp.maximum(state @ w1 + p["b1"], 0.0)
    x = jnp.maximum(x @ w2 + p["b2"], 0.0)
    head = x @ wh + p["bh"]
    mean = head[:, :A]
    log_std = jnp.clip(head[:, A:2 * A], -20.0, 2.0)
    return mean, jnp.exp(log_std)


if __name__ == "__main__":
    key = jax.random.PRNGKey(0)
    k_params, k_state = jax.random.split(key)

    batch, state_dim, action_dim, hidden_dim = 2, 16, 8, 32

    params = init_actor_params(k_params, state_dim, action_dim, hidden_dim)
    state = jax.random.normal(k_state, (batch, state_dim), jnp.float32)

    mean, std = actor_forward(state, params)
    jax.block_until_ready((mean, std))

    ref_mean, ref_std = actor_reference(state, params)
    assert mean.shape == (batch, action_dim) and std.shape == (batch, action_dim)
    # bf16 MXU operands -> relaxed tolerance vs. the f32 reference.
    assert jnp.allclose(mean, ref_mean, atol=3e-2, rtol=3e-2)
    assert jnp.allclose(std, ref_std, atol=3e-2, rtol=3e-2)
    assert bool(jnp.all(std > 0.0))

    # Second check: multi-tile grid with a partial (masked) last batch block.
    state2 = jax.random.normal(jax.random.PRNGKey(1), (50, state_dim), jnp.float32)
    mean2, std2 = actor_forward(state2, params)
    jax.block_until_ready((mean2, std2))
    ref_mean2, ref_std2 = actor_reference(state2, params)
    assert mean2.shape == (50, action_dim) and std2.shape == (50, action_dim)
    assert jnp.allclose(mean2, ref_mean2, atol=3e-2, rtol=3e-2)
    assert jnp.allclose(std2, ref_std2, atol=3e-2, rtol=3e-2)
    assert bool(jnp.all(std2 > 0.0))

    print("KERNEL_OK")
</pallas_src>

<mosaic_0001>
module attributes {stable_mosaic.version = 11 : i64} {
  func.func @_actor_kernel(%arg0: i32, %arg1: memref<8x16xf32, #tpu.memory_space<vmem>>, %arg2: memref<16x32xbf16, #tpu.memory_space<vmem>>, %arg3: memref<32x32xbf16, #tpu.memory_space<vmem>>, %arg4: memref<32x128xbf16, #tpu.memory_space<vmem>>, %arg5: memref<1x32xf32, #tpu.memory_space<vmem>>, %arg6: memref<1x32xf32, #tpu.memory_space<vmem>>, %arg7: memref<1x128xf32, #tpu.memory_space<vmem>>, %arg8: memref<8x128xf32, #tpu.memory_space<vmem>>) attributes {dimension_semantics = [#tpu.dimension_semantics<parallel>], iteration_bounds = array<i64: 1>, scalar_prefetch = 0 : i64, scratch_operands = 0 : i64, tpu.core_type = #tpu.core_type<tc>, window_params = [{transform_indices = @transform_0, window_bounds = array<i64: 8, 16>}, {pipeline_mode = #tpu.pipeline_mode<synchronous>, transform_indices = @transform_1, window_bounds = array<i64: 16, 32>}, {pipeline_mode = #tpu.pipeline_mode<synchronous>, transform_indices = @transform_2, window_bounds = array<i64: 32, 32>}, {pipeline_mode = #tpu.pipeline_mode<synchronous>, transform_indices = @transform_3, window_bounds = array<i64: 32, 128>}, {pipeline_mode = #tpu.pipeline_mode<synchronous>, transform_indices = @transform_4, window_bounds = array<i64: 1, 32>}, {pipeline_mode = #tpu.pipeline_mode<synchronous>, transform_indices = @transform_5, window_bounds = array<i64: 1, 32>}, {pipeline_mode = #tpu.pipeline_mode<synchronous>, transform_indices = @transform_6, window_bounds = array<i64: 1, 128>}, {transform_indices = @transform_7, window_bounds = array<i64: 8, 128>}]} {
    %c0 = arith.constant 0 : index
    %c0_0 = arith.constant 0 : index
    %0 = vector.load %arg1[%c0, %c0_0] : memref<8x16xf32, #tpu.memory_space<vmem>>, vector<8x16xf32>
    %1 = arith.truncf %0 : vector<8x16xf32> to vector<8x16xbf16>
    %c0_1 = arith.constant 0 : index
    %c0_2 = arith.constant 0 : index
    %2 = vector.load %arg2[%c0_1, %c0_2] : memref<16x32xbf16, #tpu.memory_space<vmem>>, vector<16x32xbf16>
    %cst = arith.constant dense<0.000000e+00> : vector<8x32xf32>
    %3 = tpu.matmul %1, %2, %cst {dimension_numbers = #tpu.dot_dimension_numbers<[1], [0], [0], [1], [0, 0, 1, 1], [], []>} : vector<8x16xbf16>, vector<16x32xbf16>, vector<8x32xf32> -> vector<8x32xf32>
    %c0_3 = arith.constant 0 : index
    %c0_4 = arith.constant 0 : index
    %4 = vector.load %arg5[%c0_3, %c0_4] : memref<1x32xf32, #tpu.memory_space<vmem>>, vector<1x32xf32>
    %5 = vector.broadcast %4 : vector<1x32xf32> to vector<8x32xf32>
    %6 = arith.addf %3, %5 : vector<8x32xf32>
    %cst_5 = arith.constant 0.000000e+00 : f32
    %7 = vector.broadcast %cst_5 : f32 to vector<8x32xf32>
    %8 = arith.maximumf %6, %7 : vector<8x32xf32>
    %9 = arith.truncf %8 : vector<8x32xf32> to vector<8x32xbf16>
    %c0_6 = arith.constant 0 : index
    %c0_7 = arith.constant 0 : index
    %10 = vector.load %arg3[%c0_6, %c0_7] : memref<32x32xbf16, #tpu.memory_space<vmem>>, vector<32x32xbf16>
    %cst_8 = arith.constant dense<0.000000e+00> : vector<8x32xf32>
    %11 = tpu.matmul %9, %10, %cst_8 {dimension_numbers = #tpu.dot_dimension_numbers<[1], [0], [0], [1], [0, 0, 1, 1], [], []>} : vector<8x32xbf16>, vector<32x32xbf16>, vector<8x32xf32> -> vector<8x32xf32>
    %c0_9 = arith.constant 0 : index
    %c0_10 = arith.constant 0 : index
    %12 = vector.load %arg6[%c0_9, %c0_10] : memref<1x32xf32, #tpu.memory_space<vmem>>, vector<1x32xf32>
    %13 = vector.broadcast %12 : vector<1x32xf32> to vector<8x32xf32>
    %14 = arith.addf %11, %13 : vector<8x32xf32>
    %cst_11 = arith.constant 0.000000e+00 : f32
    %15 = vector.broadcast %cst_11 : f32 to vector<8x32xf32>
    %16 = arith.maximumf %14, %15 : vector<8x32xf32>
    %17 = arith.truncf %16 : vector<8x32xf32> to vector<8x32xbf16>
    %c0_12 = arith.constant 0 : index
    %c0_13 = arith.constant 0 : index
    %18 = vector.load %arg4[%c0_12, %c0_13] : memref<32x128xbf16, #tpu.memory_space<vmem>>, vector<32x128xbf16>
    %cst_14 = arith.constant dense<0.000000e+00> : vector<8x128xf32>
    %19 = tpu.matmul %17, %18, %cst_14 {dimension_numbers = #tpu.dot_dimension_numbers<[1], [0], [0], [1], [0, 0, 1, 1], [], []>} : vector<8x32xbf16>, vector<32x128xbf16>, vector<8x128xf32> -> vector<8x128xf32>
    %c0_15 = arith.constant 0 : index
    %c0_16 = arith.constant 0 : index
    %20 = vector.load %arg7[%c0_15, %c0_16] : memref<1x128xf32, #tpu.memory_space<vmem>>, vector<1x128xf32>
    %21 = vector.broadcast %20 : vector<1x128xf32> to vector<8x128xf32>
    %22 = arith.addf %19, %21 : vector<8x128xf32>
    %23 = tpu.iota {dimensions = array<i32: 1>} : vector<8x128xi32>
    %cst_17 = arith.constant -2.000000e+01 : f32
    %cst_18 = arith.constant 2.000000e+00 : f32
    %24 = vector.broadcast %cst_17 : f32 to vector<8x128xf32>
    %25 = arith.maximumf %24, %22 : vector<8x128xf32>
    %26 = vector.broadcast %cst_18 : f32 to vector<8x128xf32>
    %27 = arith.minimumf %26, %25 : vector<8x128xf32>
    %28 = math.exp %27 : vector<8x128xf32>
    %c8_i32 = arith.constant 8 : i32
    %29 = vector.broadcast %c8_i32 : i32 to vector<8x128xi32>
    %30 = arith.cmpi sge, %23, %29 : vector<8x128xi32>
    %31 = arith.select %30, %28, %22 : vector<8x128xi1>, vector<8x128xf32>
    %c0_19 = arith.constant 0 : index
    %c0_20 = arith.constant 0 : index
    %32 = vector.load %arg8[%c0_19, %c0_20] : memref<8x128xf32, #tpu.memory_space<vmem>>, vector<8x128xf32>
    tpu.vector_store %arg8[%c0_19, %c0_20], %31 {strides = array<i32>} : memref<8x128xf32, #tpu.memory_space<vmem>>, vector<8x128xf32>,
    return
  }
  func.func @transform_0(%arg0: i32) -> (i32, i32) {
    %c0_i32 = arith.constant 0 : i32
    %c0_i32_0 = arith.constant 0 : i32
    return %arg0, %c0_i32 : i32, i32
  }
  func.func @transform_1(%arg0: i32) -> (i32, i32) {
    %c0_i32 = arith.constant 0 : i32
    %c0_i32_0 = arith.constant 0 : i32
    %c0_i32_1 = arith.constant 0 : i32
    return %c0_i32, %c0_i32_0 : i32, i32
  }
  func.func @transform_2(%arg0: i32) -> (i32, i32) {
    %c0_i32 = arith.constant 0 : i32
    %c0_i32_0 = arith.constant 0 : i32
    %c0_i32_1 = arith.constant 0 : i32
    return %c0_i32, %c0_i32_0 : i32, i32
  }
  func.func @transform_3(%arg0: i32) -> (i32, i32) {
    %c0_i32 = arith.constant 0 : i32
    %c0_i32_0 = arith.constant 0 : i32
    %c0_i32_1 = arith.constant 0 : i32
    return %c0_i32, %c0_i32_0 : i32, i32
  }
  func.func @transform_4(%arg0: i32) -> (i32, i32) {
    %c0_i32 = arith.constant 0 : i32
    %c0_i32_0 = arith.constant 0 : i32
    %c0_i32_1 = arith.constant 0 : i32
    return %c0_i32, %c0_i32_0 : i32, i32
  }
  func.func @transform_5(%arg0: i32) -> (i32, i32) {
    %c0_i32 = arith.constant 0 : i32
    %c0_i32_0 = arith.constant 0 : i32
    %c0_i32_1 = arith.constant 0 : i32
    return %c0_i32, %c0_i32_0 : i32, i32
  }
  func.func @transform_6(%arg0: i32) -> (i32, i32) {
    %c0_i32 = arith.constant 0 : i32
    %c0_i32_0 = arith.constant 0 : i32
    %c0_i32_1 = arith.constant 0 : i32
    return %c0_i32, %c0_i32_0 : i32, i32
  }
  func.func @transform_7(%arg0: i32) -> (i32, i32) {
    %c0_i32 = arith.constant 0 : i32
    %c0_i32_0 = arith.constant 0 : i32
    return %arg0, %c0_i32 : i32, i32
  }
}

</mosaic_0001>

<llo_original>
// kernel: tpu_custom_call.1
$region0: #{tpu_custom_call.1}
  #allocation0 [shape = 'u32[]', space=smem, size = 0x4, offset = 0x4, fixed_abs, tag = 'smem constant byte address 0x4 - core index']
  #allocation1 [shape = 'u32[72,128]{1,0:T(1,128)}', space=vmem, size = 0x9000, scoped, tag = 'internal scratch']
  %s0 = inlined_call_operand.hbm [shape: f32[2,16], index: 0, kind: input, shape index: {}]
  %s1 = inlined_call_operand.hbm [shape: bf16[16,32], index: 1, kind: input, shape index: {}]
  %s2 = inlined_call_operand.hbm [shape: bf16[32,32], index: 2, kind: input, shape index: {}]
  %s3 = inlined_call_operand.hbm [shape: bf16[32,128], index: 3, kind: input, shape index: {}]
  %s4 = inlined_call_operand.vmem [shape: f32[1,32], index: 4, kind: input, shape index: {}]
  %s5 = inlined_call_operand.vmem [shape: f32[1,32], index: 5, kind: input, shape index: {}]
  %s6 = inlined_call_operand.vmem [shape: f32[1,128], index: 6, kind: input, shape index: {}]
  %s7 = inlined_call_operand.hbm [shape: f32[2,128], index: 7, kind: output, shape index: {}]
  %s8 = sld [smem:[#allocation0]]
  $region54: #{tpu_custom_call.1} parent=0
    _
  %s10 = ssub.s32 1, %s8
  %s11 = scalar_select 0, %s10, %s8
  $region1: #{tpu_custom_call.1} parent=0
    #allocation2 [shape = 'u8[4096]{0}', space=vmem, size = 0x1000, scoped, tag = 'input window, operand 0, single buffered']
    #allocation3 [shape = 's32[1]{0}', space=sflag, size = 0x4, scoped, tag = 'scoped memory for tpu_custom_call.1']
    #allocation4 [shape = 's32[1]{0}', space=sflag, size = 0x4, scoped, tag = 'scoped memory for tpu_custom_call.1']
    #allocation5 [shape = 'u8[4096]{0}', space=vmem, size = 0x1000, scoped, tag = 'input window, operand 1, single buffered']
    #allocation6 [shape = 's32[1]{0}', space=sflag, size = 0x4, scoped, tag = 'scoped memory for tpu_custom_call.1']
    #allocation7 [shape = 'u8[8192]{0}', space=vmem, size = 0x2000, scoped, tag = 'input window, operand 2, single buffered']
    #allocation8 [shape = 'u8[8192]{0}', space=vmem, size = 0x2000, scoped, tag = 'input window, operand 3, single buffered']
    #allocation9 [shape = 's32[1]{0}', space=sflag, size = 0x4, scoped, tag = 'scoped memory for tpu_custom_call.1']
    #allocation10 [shape = 'u8[4096]{0}', space=vmem, size = 0x1000, scoped, tag = 'output window, operand 0, single buffered']
    %12 = vsyncpa [#allocation3], 0
    %13 = vsyncpa [#allocation6], 0
    %14 = vsyncpa [#allocation9], 0
    %15 = vsyncpa [#allocation4], 0
    // Predicated region
    $region2: #{tpu_custom_call.1} parent=1 // pred_check
      _
    $region3: #{tpu_custom_call.1} parent=1 // pred_check_branch
      %17 = sbr.rel (0) target = $region5
    $region4: #{tpu_custom_call.1} parent=1 // pred_region
      %19 = vsyncadd [#allocation3], 96
      %s20 = sshll.u32 %s0, 4
      %s21 = int_to_ptr.hbm [resolvable:$true] %s20
      %s22 = sshll.u32 [#allocation2], 4
      %s23 = int_to_ptr.vmem [resolvable:$true] %s22
      %28 = dma.hbm_to_vmem [thread:$0]  %s21, 32, %s23, [#allocation3], 32, 32, 2
    $region5: #{tpu_custom_call.1} parent=1 // pred_fallthru
      _
    // Predicated region
    $region6: #{tpu_custom_call.1} parent=1 // pred_check
      _
    $region7: #{tpu_custom_call.1} parent=1 // pred_check_branch
      %30 = sbr.rel (0) target = $region9
    $region8: #{tpu_custom_call.1} parent=1 // pred_region
      %32 = vsyncadd [#allocation6], 0
      %s33 = sshll.u32 %s1, 4
      %s34 = int_to_ptr.hbm [resolvable:$true] %s33
      %s35 = sshll.u32 [#allocation5], 4
      %s36 = int_to_ptr.vmem [resolvable:$true] %s35
      %41 = dma.hbm_to_vmem [thread:$0]  %s34, 128, %s36, [#allocation6], 64, 64, 4
    $region9: #{tpu_custom_call.1} parent=1 // pred_fallthru
      _
    // Predicated region
    $region10: #{tpu_custom_call.1} parent=1 // pred_check
      _
    $region11: #{tpu_custom_call.1} parent=1 // pred_check_branch
      %43 = sbr.rel (0) target = $region13
    $region12: #{tpu_custom_call.1} parent=1 // pred_region
      %45 = vsyncadd [#allocation6], 0
      %s46 = sshll.u32 %s2, 4
      %s47 = int_to_ptr.hbm [resolvable:$true] %s46
      %s48 = sshll.u32 [#allocation7], 4
      %s49 = int_to_ptr.vmem [resolvable:$true] %s48
      %54 = dma.hbm_to_vmem [thread:$0]  %s47, 256, %s49, [#allocation6], 64, 64, 4
    $region13: #{tpu_custom_call.1} parent=1 // pred_fallthru
      _
    // Predicated region
    $region14: #{tpu_custom_call.1} parent=1 // pred_check
      _
    $region15: #{tpu_custom_call.1} parent=1 // pred_check_branch
      %56 = sbr.rel (0) target = $region17
    $region16: #{tpu_custom_call.1} parent=1 // pred_region
      %58 = vsyncadd [#allocation9], 0
      %s59 = sshll.u32 %s3, 4
      %s60 = int_to_ptr.hbm [resolvable:$true] %s59
      %s61 = sshll.u32 [#allocation8], 4
      %s62 = int_to_ptr.vmem [resolvable:$true] %s61
      %67 = dma.hbm_to_vmem [thread:$0]  %s60, 256, %s62, [#allocation9], 64, 64, 4
    $region17: #{tpu_custom_call.1} parent=1 // pred_fallthru
      _
    // Predicated region
    $region18: #{tpu_custom_call.1} parent=1 // pred_check
      _
    $region19: #{tpu_custom_call.1} parent=1 // pred_check_branch
      %69 = sbr.rel (0) target = $region21
    $region20: #{tpu_custom_call.1} parent=1 // pred_region
      _
    $region21: #{tpu_custom_call.1} parent=1 // pred_fallthru
      _
    // Predicated region
    $region22: #{tpu_custom_call.1} parent=1 // pred_check
      _
    $region23: #{tpu_custom_call.1} parent=1 // pred_check_branch
      %71 = sbr.rel (0) target = $region25
    $region24: #{tpu_custom_call.1} parent=1 // pred_region
      _
    $region25: #{tpu_custom_call.1} parent=1 // pred_fallthru
      _
    // Predicated region
    $region26: #{tpu_custom_call.1} parent=1 // pred_check
      _
    $region27: #{tpu_custom_call.1} parent=1 // pred_check_branch
      %73 = sbr.rel (0) target = $region29
    $region28: #{tpu_custom_call.1} parent=1 // pred_region
      _
    $region29: #{tpu_custom_call.1} parent=1 // pred_fallthru
      _
    // Predicated region
    $region30: #{tpu_custom_call.1} parent=1 // pred_check
      _
    $region31: #{tpu_custom_call.1} parent=1 // pred_check_branch
      %75 = sbr.rel (0) target = $region33
    $region32: #{tpu_custom_call.1} parent=1 // pred_region
      %77 = dma.done [#allocation3], 128
    $region33: #{tpu_custom_call.1} parent=1 // pred_fallthru
      _
    // Predicated region
    $region34: #{tpu_custom_call.1} parent=1 // pred_check
      _
    $region35: #{tpu_custom_call.1} parent=1 // pred_check_branch
      %79 = sbr.rel (0) target = $region37
    $region36: #{tpu_custom_call.1} parent=1 // pred_region
      %81 = dma.done [#allocation6], 128
    $region37: #{tpu_custom_call.1} parent=1 // pred_fallthru
      _
    // Predicated region
    $region38: #{tpu_custom_call.1} parent=1 // pred_check
      _
    $region39: #{tpu_custom_call.1} parent=1 // pred_check_branch
      %83 = sbr.rel (0) target = $region41
    $region40: #{tpu_custom_call.1} parent=1 // pred_region
      %85 = dma.done [#allocation6], 256
    $region41: #{tpu_custom_call.1} parent=1 // pred_fallthru
      _
    // Predicated region
    $region42: #{tpu_custom_call.1} parent=1 // pred_check
      _
    $region43: #{tpu_custom_call.1} parent=1 // pred_check_branch
      %87 = sbr.rel (0) target = $region45
    $region44: #{tpu_custom_call.1} parent=1 // pred_region
      %89 = dma.done [#allocation9], 256
    $region45: #{tpu_custom_call.1} parent=1 // pred_fallthru
      _
    %v91 = vld [vmem:[#allocation2] sm:$0xff]
    %v92 = vpack.c.bf16 %v91, %v91
    %v93 = vld [vmem:[#allocation5] sm:$0xf]
    %v94 = vld [vmem:[#allocation5 + $0x4] sm:$0xf]
    %v95 = vld [vmem:[%s4] sm:$0x1]
    %v97 = vperm.slane %v95, 0
    %v101 = vunpack.c.l.b16 %v93
    %v102 = vunpack.c.l.b16 %v94
    %v103 = vpack.c.b16 %v102, %v101
    %vm105 = vcmask 130048
    %v107 = vsel %vm105, %v92, 0
    %109 = vmatpush.bf16.msra.mxu0 0
    %110 = vmatpush.bf16.msra.mxu0 0
    %111 = vmatpush.bf16.msra.mxu0 0
    %112 = vmatpush.bf16.msra.mxu0 0
    %113 = vmatpush.bf16.msra.mxu0 0
    %114 = vmatpush.bf16.msra.mxu0 0
    %115 = vmatpush.bf16.msra.mxu0 0
    %116 = vmatpush.bf16.msra.mxu0 %v103
    %117 = vmatmul.bf16.gmra.mxu0 %v107
    %v118 = vpop.f32.mrf.mxu0
    %v119 = vadd.f32 %v97, %v118
    %v120 = vpop.f32.mrf.mxu0
    %121 = vdwg.mxu0
    %v122 = vmax.f32 %v119, 0.0
    %v123 = vpack.c.bf16 %v122, %v122
    %v124 = vld [vmem:[#allocation7] sm:$0xf]
    %v125 = vld [vmem:[#allocation7 + $0x4] sm:$0xf]
    %v126 = vld [vmem:[#allocation7 + $0x8] sm:$0xf]
    %v127 = vld [vmem:[#allocation7 + $0xc] sm:$0xf]
    %v128 = vld [vmem:[%s5] sm:$0x1]
    %v130 = vperm.slane %v128, 0
    %v136 = vunpack.c.l.b16 %v124
    %v137 = vunpack.c.l.b16 %v125
    %v138 = vunpack.c.l.b16 %v126
    %v139 = vunpack.c.l.b16 %v127
    %v140 = vpack.c.b16 %v137, %v136
    %v141 = vpack.c.b16 %v139, %v138
    %vm144 = vcmask 261120
    %v146 = vsel %vm144, %v123, 0
    %148 = vmatpush.bf16.msra.mxu0 0
    %149 = vmatpush.bf16.msra.mxu0 0
    %150 = vmatpush.bf16.msra.mxu0 0
    %151 = vmatpush.bf16.msra.mxu0 0
    %152 = vmatpush.bf16.msra.mxu0 0
    %153 = vmatpush.bf16.msra.mxu0 0
    %154 = vmatpush.bf16.msra.mxu0 %v141
    %155 = vmatpush.bf16.msra.mxu0 %v140
    %156 = vmatmul.bf16.gmra.mxu0 %v146
    %v157 = vpop.f32.mrf.mxu0
    %v158 = vadd.f32 %v130, %v157
    %v159 = vpop.f32.mrf.mxu0
    %160 = vdwg.mxu0
    %v161 = vmax.f32 %v158, 0.0
    %v162 = vpack.c.bf16 %v161, %v161
    %v163 = vld [vmem:[#allocation8] sm:$0xf]
    %v164 = vld [vmem:[#allocation8 + $0x4] sm:$0xf]
    %v165 = vld [vmem:[#allocation8 + $0x8] sm:$0xf]
    %v166 = vld [vmem:[#allocation8 + $0xc] sm:$0xf]
    %v167 = vld [vmem:[%s6] sm:$0x1]
    %v169 = vperm.slane %v167, 0
    %v175 = vunpack.c.l.b16 %v163
    %v176 = vunpack.c.l.b16 %v164
    %v177 = vunpack.c.l.b16 %v165
    %v178 = vunpack.c.l.b16 %v166
    %v179 = vpack.c.b16 %v176, %v175
    %v180 = vpack.c.b16 %v178, %v177
    %v184 = vsel %vm144, %v162, 0
    %186 = vmatpush.bf16.msra.mxu0 0
    %187 = vmatpush.bf16.msra.mxu0 0
    %188 = vmatpush.bf16.msra.mxu0 0
    %189 = vmatpush.bf16.msra.mxu0 0
    %190 = vmatpush.bf16.msra.mxu0 0
    %191 = vmatpush.bf16.msra.mxu0 0
    %192 = vmatpush.bf16.msra.mxu0 %v180
    %193 = vmatpush.bf16.msra.mxu0 %v179
    %194 = vmatmul.bf16.gmra.mxu0 %v184
    %v195 = vpop.f32.mrf.mxu0
    %v196 = vadd.f32 %v169, %v195
    %v197 = vpop.f32.mrf.mxu0
    %198 = vdwg.mxu0
    %v199 = vlaneseq
    %v200 = vand.u32 %v199, 127
    %v201 = vmax.f32 %v196, -20.0
    %v202 = vmin.f32 %v201, 2.0
    %v203 = vmul.f32 %v202, 1.442695
    %v204 = vpow.pop %v203
    %vm205 = vcmp.ge.s32.totalorder %v200, 8
    %v206 = vsel %vm205, %v204, %v196
    %207 = vst [vmem:[#allocation10] sm:$0xff] %v206
    // Predicated region
    $region46: #{tpu_custom_call.1} parent=1 // pred_check
      _
    $region47: #{tpu_custom_call.1} parent=1 // pred_check_branch
      %209 = sbr.rel (0) target = $region49
    $region48: #{tpu_custom_call.1} parent=1 // pred_region
      %211 = vsyncadd [#allocation4], 96
      %s212 = sshll.u32 [#allocation10], 4
      %s213 = int_to_ptr.vmem [resolvable:$true] %s212
      %s214 = sshll.u32 %s7, 4
      %s215 = int_to_ptr.hbm [resolvable:$true] %s214
      %220 = dma.vmem_to_hbm [thread:$0]  %s213, 32, %s215, [#allocation4], 32, 32, 2
    $region49: #{tpu_custom_call.1} parent=1 // pred_fallthru
      _
    // Predicated region
    $region50: #{tpu_custom_call.1} parent=1 // pred_check
      _
    $region51: #{tpu_custom_call.1} parent=1 // pred_check_branch
      %222 = sbr.rel (0) target = $region53
    $region52: #{tpu_custom_call.1} parent=1 // pred_region
      %224 = dma.done [#allocation4], 128
    $region53: #{tpu_custom_call.1} parent=1 // pred_fallthru
      _
    %225 = vsyncpa [#allocation3], 1
    %226 = vsyncpa [#allocation6], 1
    %227 = vsyncpa [#allocation9], 1
    %228 = vsyncpa [#allocation4], 1

</llo_original>
